<compile_context>
chip_gen: v5e
topology: v5e:2x2
jax: 0.10.0
libtpu: 0.0.40
codegen_flags: <defaults>
</compile_context>

<pallas_src>
import functools

import jax
import jax.numpy as jnp
from jax import lax
from jax.experimental import pallas as pl
from jax.experimental.pallas import tpu as pltpu


def _loss_kernel(matB_ref, mcols_ref, out_ref, *, n_rows, tile_rows, any_partial):
    p = pl.program_id(0)          # parallel slice (megacore axis)
    k = pl.program_id(1)          # reduction steps within this slice

    # Output block index is constant along k -> the (8, 128) tile stays resident
    # in VMEM and acts as the accumulator for this parallel slice.
    @pl.when(k == 0)
    def _():
        out_ref[...] = jnp.zeros_like(out_ref)

    B = matB_ref[...]             # (tile_rows, dd_pad)  lane-dense, f32 or bf16
    m = mcols_ref[...]            # (dd_pad, 2): normalized rank-one coeff columns

    # MXU matvec(s): z[:, 0] = vecX^T B_n vecY ; z[:, 1] = vecY^T B_n vecX (or 0).
    z = jnp.dot(B, m, preferred_element_type=jnp.float32)   # (tile_rows, 2) f32

    if any_partial:
        # UNCLAMPED logical block index -> a duplicated tail block (v7x odd block
        # count) and the genuinely partial last block both mask to zero here.
        row0 = (p * pl.num_programs(1) + k) * tile_rows
        overhang = row0 + tile_rows > n_rows

        @pl.when(jnp.logical_not(overhang))
        def _():
            # Broadcast-add the scalar into the whole resident tile; wrapper
            # reads element [0, 0] of each slice.
            out_ref[...] += jnp.sum(z * z)

        @pl.when(overhang)
        def _():
            # Mask AFTER the matmul with an exact 0.0 select so undefined data in
            # the padded region cannot propagate (per-row dependence only).
            rows = row0 + lax.broadcasted_iota(jnp.int32, (tile_rows, 1), 0)
            zm = jnp.where(rows < n_rows, z, 0.0)
            out_ref[...] += jnp.sum(zm * zm)
    else:
        out_ref[...] += jnp.sum(z * z)


def detect_orthogonal_rank_one_loss(matB, theta0, theta1, *, tag_loss_yBx=False,
                                    tile_n=None, stream_bf16=False):
    """Pallas TPU implementation of DetectOrthogonalRankOneModel.forward().

    matB:   (N, d, d) real
    theta0: (d,) unnormalized parameter
    theta1: (d,) unnormalized parameter
    tile_n: optional cap on rows per block (None -> auto ~8 MiB blocks)
    stream_bf16: stream matB (and coeffs) as bfloat16 for ~2x bandwidth
    returns scalar float32 loss.
    """
    N, d, d2 = matB.shape
    assert d == d2, "matB must be a stack of square matrices"
    dd = d * d
    dd_pad = -(-dd // 128) * 128            # lane-dense (no-op when dd % 128 == 0)

    stream_dtype = jnp.bfloat16 if stream_bf16 else jnp.float32
    itemsize = jnp.dtype(stream_dtype).itemsize

    # NOTE: reshape/cast/pad of matB is one-time prep (matB is constant across
    # optimization steps of the original model) and should be amortized.
    matB_flat = matB.reshape(N, dd).astype(stream_dtype)
    if dd_pad != dd:
        matB_flat = jnp.pad(matB_flat, ((0, 0), (0, dd_pad - dd)))

    th0 = theta0.reshape(-1).astype(jnp.float32)
    th1 = theta1.reshape(-1).astype(jnp.float32)
    vx = th0 / jnp.linalg.norm(th0)
    vy = th1 / jnp.linalg.norm(th1)

    # Normalization folded into the coefficient columns (wrapper-side, tiny).
    c0 = jnp.outer(vx, vy).reshape(dd, 1)                       # (B@vy)@vx term
    if tag_loss_yBx:
        c1 = jnp.outer(vy, vx).reshape(dd, 1)                   # (B@vx)@vy term
    else:
        c1 = jnp.zeros((dd, 1), jnp.float32)
    m_cols = jnp.concatenate([c0, c1], axis=1)                  # (dd, 2)
    if dd_pad != dd:
        m_cols = jnp.pad(m_cols, ((0, dd_pad - dd), (0, 0)))
    m_cols = m_cols.astype(stream_dtype)                        # match matB for native MXU path

    # ~8 MiB lane-dense blocks; 2x double buffering stays well under the explicit
    # 32 MiB scoped-VMEM limit on v5e/v6e and under v7x's 64 MiB physical VMEM.
    target_block_bytes = 8 * 1024 * 1024
    rows_for_target = max(8, (target_block_bytes // (dd_pad * itemsize)) // 8 * 8)
    if tile_n is None:
        tile_rows = rows_for_target
    else:
        tile_rows = max(8, (min(int(tile_n), rows_for_target) // 8) * 8)
    if tile_rows >= N:
        tile_rows = N                        # single block (block dim == full dim is legal)

    total_blocks = -(-N // tile_rows)        # cdiv
    # Always use both TensorCores on v7x when there is more than one block; on
    # 1-TC chips the size-2 parallel axis serializes at no cost.
    num_parallel = 2 if total_blocks >= 2 else 1
    steps = -(-total_blocks // num_parallel)
    # True if any logical block (partial last block, or the duplicated block when
    # total_blocks is odd) overhangs N and needs masking.
    any_partial = num_parallel * steps * tile_rows > N

    block_bytes = tile_rows * dd_pad * itemsize
    vmem_limit = int(min(40 << 20, max(32 << 20, 3 * block_bytes + (4 << 20))))

    def matB_index_map(p, k):
        # Clamp the DMA'd block; the kernel masks the duplicate via the
        # UNCLAMPED logical index.
        return (jnp.minimum(p * steps + k, total_blocks - 1), 0)

    kernel = functools.partial(_loss_kernel, n_rows=N, tile_rows=tile_rows,
                               any_partial=any_partial)

    out = pl.pallas_call(
        kernel,
        out_shape=jax.ShapeDtypeStruct((8 * num_parallel, 128), jnp.float32),
        grid_spec=pltpu.PrefetchScalarGridSpec(
            num_scalar_prefetch=0,
            grid=(num_parallel, steps),
            in_specs=[
                pl.BlockSpec((tile_rows, dd_pad), matB_index_map),
                pl.BlockSpec((dd_pad, 2), lambda p, k: (0, 0)),
            ],
            out_specs=pl.BlockSpec((8, 128), lambda p, k: (p, 0)),
        ),
        compiler_params=pltpu.CompilerParams(
            # p: split across TensorCores on v7x (no-op on 1-TC chips);
            # k: reduction axis -> per-slice output tile stays resident.
            dimension_semantics=("parallel", "arbitrary"),
            vmem_limit_bytes=vmem_limit,
        ),
    )(matB_flat, m_cols)

    # Every element of a slice's (8,128) tile holds that slice's total
    # (broadcast accumulation); read one element per slice and sum.
    return jnp.sum(out.reshape(num_parallel, 8, 128)[:, 0, 0])


def _reference_loss(matB, theta0, theta1, tag_loss_yBx=False):
    vx = theta0 / jnp.linalg.norm(theta0)
    vy = theta1 / jnp.linalg.norm(theta1)
    z = (matB @ vy) @ vx
    loss = jnp.sum(z * z)
    if tag_loss_yBx:
        z2 = (matB @ vx) @ vy
        loss = loss + jnp.sum(z2 * z2)
    return loss


if __name__ == "__main__":
    key = jax.random.PRNGKey(0)

    cases = [
        # single lane-dense block
        dict(N=32, d=16, tag=False, tile_n=2048, bf16=False, rtol=1e-4, atol=1e-5),
        # partial last block + yBx term + odd block count (duplicated masked block)
        dict(N=36, d=16, tag=True,  tile_n=8,    bf16=False, rtol=1e-4, atol=1e-5),
        # even block count, exact tiling -> statically unmasked hot loop
        dict(N=64, d=16, tag=False, tile_n=16,   bf16=False, rtol=1e-4, atol=1e-5),
        # odd block count with exact last block -> exercises the clamped duplicate
        dict(N=40, d=16, tag=False, tile_n=16,   bf16=False, rtol=1e-4, atol=1e-5),
        # bfloat16 streaming path (looser tolerance)
        dict(N=48, d=16, tag=True,  tile_n=16,   bf16=True,  rtol=5e-2, atol=1e-3),
    ]

    for cfg in cases:
        key, kb, k0, k1 = jax.random.split(key, 4)
        N, d = cfg["N"], cfg["d"]
        matB = jax.random.normal(kb, (N, d, d), dtype=jnp.float32)
        theta0 = jax.random.uniform(k0, (d,), minval=-1.0, maxval=1.0, dtype=jnp.float32)
        theta1 = jax.random.uniform(k1, (d,), minval=-1.0, maxval=1.0, dtype=jnp.float32)

        loss = detect_orthogonal_rank_one_loss(
            matB, theta0, theta1, tag_loss_yBx=cfg["tag"], tile_n=cfg["tile_n"],
            stream_bf16=cfg["bf16"])
        loss = jax.block_until_ready(loss)

        ref = _reference_loss(matB, theta0, theta1, tag_loss_yBx=cfg["tag"])
        assert jnp.allclose(loss, ref, rtol=cfg["rtol"], atol=cfg["atol"]), (
            cfg, float(loss), float(ref))

    print("KERNEL_OK")
</pallas_src>

<mosaic_0001>
module attributes {stable_mosaic.version = 11 : i64} {
  func.func @_loss_kernel(%arg0: i32, %arg1: i32, %arg2: memref<32x256xf32, #tpu.memory_space<vmem>>, %arg3: memref<256x2xf32, #tpu.memory_space<vmem>>, %arg4: memref<8x128xf32, #tpu.memory_space<vmem>>) attributes {dimension_semantics = [#tpu.dimension_semantics<parallel>, #tpu.dimension_semantics<arbitrary>], iteration_bounds = array<i64: 1, 1>, scalar_prefetch = 0 : i64, scratch_operands = 0 : i64, tpu.core_type = #tpu.core_type<tc>, window_params = [{transform_indices = @transform_0, window_bounds = array<i64: 32, 256>}, {pipeline_mode = #tpu.pipeline_mode<synchronous>, transform_indices = @transform_1, window_bounds = array<i64: 256, 2>}, {transform_indices = @transform_2, window_bounds = array<i64: 8, 128>}]} {
    %c0_i32 = arith.constant 0 : i32
    %0 = arith.cmpi eq, %arg1, %c0_i32 : i32
    %1 = arith.extui %0 : i1 to i32
    %c0_i32_0 = arith.constant 0 : i32
    %2 = arith.cmpi ne, %1, %c0_i32_0 : i32
    scf.if %2 {
      %cst_9 = arith.constant 0.000000e+00 : f32
      %15 = vector.broadcast %cst_9 : f32 to vector<8x128xf32>
      %c0_10 = arith.constant 0 : index
      %c0_11 = arith.constant 0 : index
      %16 = vector.load %arg4[%c0_10, %c0_11] : memref<8x128xf32, #tpu.memory_space<vmem>>, vector<8x128xf32>
      tpu.vector_store %arg4[%c0_10, %c0_11], %15 {strides = array<i32>} : memref<8x128xf32, #tpu.memory_space<vmem>>, vector<8x128xf32>,
    } else {
    }
    %c0 = arith.constant 0 : index
    %c0_1 = arith.constant 0 : index
    %3 = vector.load %arg2[%c0, %c0_1] : memref<32x256xf32, #tpu.memory_space<vmem>>, vector<32x256xf32>
    %c0_2 = arith.constant 0 : index
    %c0_3 = arith.constant 0 : index
    %4 = vector.load %arg3[%c0_2, %c0_3] : memref<256x2xf32, #tpu.memory_space<vmem>>, vector<256x2xf32>
    %cst = arith.constant dense<0.000000e+00> : vector<32x2xf32>
    %5 = tpu.matmul %3, %4, %cst {dimension_numbers = #tpu.dot_dimension_numbers<[1], [0], [0], [1], [0, 0, 1, 1], [], []>} : vector<32x256xf32>, vector<256x2xf32>, vector<32x2xf32> -> vector<32x2xf32>
    %c0_4 = arith.constant 0 : index
    %c0_5 = arith.constant 0 : index
    %6 = vector.load %arg4[%c0_4, %c0_5] : memref<8x128xf32, #tpu.memory_space<vmem>>, vector<8x128xf32>
    %7 = arith.mulf %5, %5 : vector<32x2xf32>
    %8 = vector.shape_cast %7 : vector<32x2xf32> to vector<1x32x2xf32>
    %cst_6 = arith.constant dense<0.000000e+00> : vector<1xf32>
    %9 = vector.multi_reduction <add>, %8, %cst_6 [1, 2] : vector<1x32x2xf32> to vector<1xf32>
    %10 = vector.shape_cast %9 : vector<1xf32> to vector<1x1x1xf32>
    %11 = vector.extract %10[0, 0, 0] : f32 from vector<1x1x1xf32>
    %12 = vector.broadcast %11 : f32 to vector<8x128xf32>
    %13 = arith.addf %6, %12 : vector<8x128xf32>
    %c0_7 = arith.constant 0 : index
    %c0_8 = arith.constant 0 : index
    %14 = vector.load %arg4[%c0_7, %c0_8] : memref<8x128xf32, #tpu.memory_space<vmem>>, vector<8x128xf32>
    tpu.vector_store %arg4[%c0_7, %c0_8], %13 {strides = array<i32>} : memref<8x128xf32, #tpu.memory_space<vmem>>, vector<8x128xf32>,
    return
  }
  func.func @transform_0(%arg0: i32, %arg1: i32) -> (i32, i32) {
    %c1_i32 = arith.constant 1 : i32
    %0 = arith.muli %arg0, %c1_i32 : i32
    %1 = arith.addi %0, %arg1 : i32
    %c0_i32 = arith.constant 0 : i32
    %2 = arith.minsi %1, %c0_i32 : i32
    %c0_i32_0 = arith.constant 0 : i32
    %c0_i32_1 = arith.constant 0 : i32
    return %2, %c0_i32_0 : i32, i32
  }
  func.func @transform_1(%arg0: i32, %arg1: i32) -> (i32, i32) {
    %c0_i32 = arith.constant 0 : i32
    %c0_i32_0 = arith.constant 0 : i32
    %c0_i32_1 = arith.constant 0 : i32
    return %c0_i32, %c0_i32_0 : i32, i32
  }
  func.func @transform_2(%arg0: i32, %arg1: i32) -> (i32, i32) {
    %c0_i32 = arith.constant 0 : i32
    %c0_i32_0 = arith.constant 0 : i32
    return %arg0, %c0_i32 : i32, i32
  }
}

</mosaic_0001>

<llo_original>
// kernel: tpu_custom_call.1
$region0: #{tpu_custom_call.1}
  #allocation0 [shape = 'u32[]', space=smem, size = 0x4, offset = 0x4, fixed_abs, tag = 'smem constant byte address 0x4 - core index']
  #allocation1 [shape = 'u32[72,128]{1,0:T(1,128)}', space=vmem, size = 0x9000, scoped, tag = 'internal scratch']
  %s0 = inlined_call_operand.vmem [shape: f32[32,256], index: 0, kind: input, shape index: {}]
  %s1 = inlined_call_operand.vmem [shape: f32[256,2], index: 1, kind: input, shape index: {}]
  %s2 = inlined_call_operand.hbm [shape: f32[8,128], index: 2, kind: output, shape index: {}]
  %s3 = sld [smem:[#allocation0]]
  $region22: #{tpu_custom_call.1} parent=0
    _
  %s5 = ssub.s32 1, %s3
  %s6 = scalar_select 0, %s5, %s3
  $region1: #{tpu_custom_call.1} parent=0
    #allocation2 [shape = 'u8[4096]{0}', space=vmem, size = 0x1000, scoped, tag = 'output window, operand 0, single buffered']
    #allocation3 [shape = 's32[1]{0}', space=sflag, size = 0x4, scoped, tag = 'scoped memory for tpu_custom_call.1']
    %7 = vsyncpa [#allocation3], 0
    // Predicated region
    $region2: #{tpu_custom_call.1} parent=1 // pred_check
      _
    $region3: #{tpu_custom_call.1} parent=1 // pred_check_branch
      %9 = sbr.rel (0) target = $region5
    $region4: #{tpu_custom_call.1} parent=1 // pred_region
      %s10 = sadd.s32 0, 0
      %p11 = scmp.lt.s32.totalorder %s10, 0
      %s12 = scalar_select %p11, %s10, 0
      %s13 = smul.u32 4, %s12
      %p14 = scmp.lt.s32.totalorder %s13, 3
      %s15 = scalar_select %p14, %s13, 3
      %s16 = smul.addr %s15, 2
      %s17 = smul.addr %s16, 8
      %s18 = scalar_lea.vmem %s0, %s17
      %s19 = sadd.s32 0, 0
      %p20 = scmp.lt.s32.totalorder %s19, 0
      %s21 = scalar_select %p20, %s19, 0
      %s22 = smul.u32 4, %s21
    $region5: #{tpu_custom_call.1} parent=1 // pred_fallthru
      _
    // Predicated region
    $region6: #{tpu_custom_call.1} parent=1 // pred_check
      _
    $region7: #{tpu_custom_call.1} parent=1 // pred_check_branch
      %24 = sbr.rel (0) target = $region9
    $region8: #{tpu_custom_call.1} parent=1 // pred_region
      _
    $region9: #{tpu_custom_call.1} parent=1 // pred_fallthru
      _
    %s25 = sadd.s32 0, 0
    %p26 = scmp.lt.s32.totalorder %s25, 0
    %s27 = scalar_select %p26, %s25, 0
    %s28 = smul.u32 4, %s27
    %p29 = scmp.lt.s32.totalorder %s28, 3
    %s30 = scalar_select %p29, %s28, 3
    %s31 = smul.addr %s30, 2
    %s32 = smul.addr %s31, 8
    %s33 = scalar_lea.vmem %s0, %s32
    %s34 = sadd.s32 0, 0
    %p35 = scmp.lt.s32.totalorder %s34, 0
    %s36 = scalar_select %p35, %s34, 0
    %s37 = smul.u32 4, %s36
    %p38 = scmp.lt.s32.totalorder %s37, 3
    %s39 = scalar_select %p38, %s37, 3
    %s40 = smul.addr %s39, 2
    %s41 = smul.addr %s40, 8
    %s42 = scalar_lea.vmem %s0, %s41
    %s43 = sadd.s32 0, 0
    %p44 = scmp.lt.s32.totalorder %s43, 0
    %s45 = scalar_select %p44, %s43, 0
    %s46 = smul.u32 4, %s45
    %p47 = scmp.eq.s32.totalorder 0, 0
    // Predicated region
    $region10: #{tpu_custom_call.1} parent=1 // pred_check
      %p48 = pneg %p47
    $region11: #{tpu_custom_call.1} parent=1 // pred_check_branch
      %50 = sbr.rel (%p48) target = $region13
    $region12: #{tpu_custom_call.1} parent=1 // pred_region
      %51 = vst [vmem:[#allocation2] sm:$0xff] 0.0
    $region13: #{tpu_custom_call.1} parent=1 // pred_fallthru
      _
    %v52 = vld [vmem:[%s42] sm:$0xff]
    %v53 = vld [vmem:[%s42 + $0x8] sm:$0xff]
    %v54 = vld [vmem:[%s42 + $0x10] sm:$0xff]
    %v55 = vld [vmem:[%s42 + $0x18] sm:$0xff]
    %v56 = vld [vmem:[%s42 + $0x20] sm:$0xff]
    %v57 = vld [vmem:[%s42 + $0x28] sm:$0xff]
    %v58 = vld [vmem:[%s42 + $0x30] sm:$0xff]
    %v59 = vld [vmem:[%s42 + $0x38] sm:$0xff]
    %v60 = vld [vmem:[%s1] sm:$0xff]
    %v61 = vld [vmem:[%s1 + $0x8] sm:$0xff]
    %v62 = vld [vmem:[%s1 + $0x10] sm:$0xff]
    %v63 = vld [vmem:[%s1 + $0x18] sm:$0xff]
    %v64 = vld [vmem:[%s1 + $0x20] sm:$0xff]
    %v65 = vld [vmem:[%s1 + $0x28] sm:$0xff]
    %v66 = vld [vmem:[%s1 + $0x30] sm:$0xff]
    %v67 = vld [vmem:[%s1 + $0x38] sm:$0xff]
    %v68 = vld [vmem:[%s1 + $0x40] sm:$0xff]
    %v69 = vld [vmem:[%s1 + $0x48] sm:$0xff]
    %v70 = vld [vmem:[%s1 + $0x50] sm:$0xff]
    %v71 = vld [vmem:[%s1 + $0x58] sm:$0xff]
    %v72 = vld [vmem:[%s1 + $0x60] sm:$0xff]
    %v73 = vld [vmem:[%s1 + $0x68] sm:$0xff]
    %v74 = vld [vmem:[%s1 + $0x70] sm:$0xff]
    %v75 = vld [vmem:[%s1 + $0x78] sm:$0xff]
    %v76 = vld [vmem:[%s1 + $0x80] sm:$0xff]
    %v77 = vld [vmem:[%s1 + $0x88] sm:$0xff]
    %v78 = vld [vmem:[%s1 + $0x90] sm:$0xff]
    %v79 = vld [vmem:[%s1 + $0x98] sm:$0xff]
    %v80 = vld [vmem:[%s1 + $0xa0] sm:$0xff]
    %v81 = vld [vmem:[%s1 + $0xa8] sm:$0xff]
    %v82 = vld [vmem:[%s1 + $0xb0] sm:$0xff]
    %v83 = vld [vmem:[%s1 + $0xb8] sm:$0xff]
    %v84 = vld [vmem:[%s1 + $0xc0] sm:$0xff]
    %v85 = vld [vmem:[%s1 + $0xc8] sm:$0xff]
    %v86 = vld [vmem:[%s1 + $0xd0] sm:$0xff]
    %v87 = vld [vmem:[%s1 + $0xd8] sm:$0xff]
    %v88 = vld [vmem:[%s1 + $0xe0] sm:$0xff]
    %v89 = vld [vmem:[%s1 + $0xe8] sm:$0xff]
    %v90 = vld [vmem:[%s1 + $0xf0] sm:$0xff]
    %v91 = vld [vmem:[%s1 + $0xf8] sm:$0xff]
    %92 = vmatpush.msra.mxu0 %v75
    %93 = vmatpush.msra.mxu0 %v74
    %94 = vmatpush.msra.mxu0 %v73
    %95 = vmatpush.msra.mxu0 %v72
    %96 = vmatpush.msra.mxu0 %v71
    %97 = vmatpush.msra.mxu0 %v70
    %98 = vmatpush.msra.mxu0 %v69
    %99 = vmatpush.msra.mxu0 %v68
    %100 = vmatpush.msra.mxu0 %v67
    %101 = vmatpush.msra.mxu0 %v66
    %102 = vmatpush.msra.mxu0 %v65
    %103 = vmatpush.msra.mxu0 %v64
    %104 = vmatpush.msra.mxu0 %v63
    %105 = vmatpush.msra.mxu0 %v62
    %106 = vmatpush.msra.mxu0 %v61
    %107 = vmatpush.msra.mxu0 %v60
    %108 = vmatmul.f32.gmra.mxu0 %v52
    %v109 = vpop.f32.mrf.mxu0
    %v110 = vadd.f32 0.0, %v109
    %111 = vmatmul.f32.gmra.mxu0 %v54
    %v112 = vpop.f32.mrf.mxu0
    %v113 = vadd.f32 0.0, %v112
    %114 = vmatmul.f32.gmra.mxu0 %v56
    %v115 = vpop.f32.mrf.mxu0
    %v116 = vadd.f32 0.0, %v115
    %117 = vmatmul.f32.gmra.mxu0 %v58
    %v118 = vpop.f32.mrf.mxu0
    %v119 = vadd.f32 0.0, %v118
    %120 = vdwg.mxu0
    %121 = vmatpush.msra.mxu0 %v91
    %122 = vmatpush.msra.mxu0 %v90
    %123 = vmatpush.msra.mxu0 %v89
    %124 = vmatpush.msra.mxu0 %v88
    %125 = vmatpush.msra.mxu0 %v87
    %126 = vmatpush.msra.mxu0 %v86
    %127 = vmatpush.msra.mxu0 %v85
    %128 = vmatpush.msra.mxu0 %v84
    %129 = vmatpush.msra.mxu0 %v83
    %130 = vmatpush.msra.mxu0 %v82
    %131 = vmatpush.msra.mxu0 %v81
    %132 = vmatpush.msra.mxu0 %v80
    %133 = vmatpush.msra.mxu0 %v79
    %134 = vmatpush.msra.mxu0 %v78
    %135 = vmatpush.msra.mxu0 %v77
    %136 = vmatpush.msra.mxu0 %v76
    %137 = vmatmul.f32.gmra.mxu0 %v53
    %v138 = vpop.f32.mrf.mxu0
    %v139 = vadd.f32 %v110, %v138
    %140 = vmatmul.f32.gmra.mxu0 %v55
    %v141 = vpop.f32.mrf.mxu0
    %v142 = vadd.f32 %v113, %v141
    %143 = vmatmul.f32.gmra.mxu0 %v57
    %v144 = vpop.f32.mrf.mxu0
    %v145 = vadd.f32 %v116, %v144
    %146 = vmatmul.f32.gmra.mxu0 %v59
    %v147 = vpop.f32.mrf.mxu0
    %v148 = vadd.f32 %v119, %v147
    %149 = vdwg.mxu0
    %v150 = vld [vmem:[#allocation2] sm:$0xff]
    %v151 = vmul.f32 %v139, %v139
    %v152 = vmul.f32 %v142, %v142
    %v153 = vmul.f32 %v145, %v145
    %v154 = vmul.f32 %v148, %v148
    %vm155 = vcmask 15360
    %v156 = vsel %vm155, %v151, 0.0
    %v157 = vsel %vm155, %v152, 0.0
    %v158 = vadd.f32 %v156, %v157
    %v159 = vsel %vm155, %v153, 0.0
    %v160 = vadd.f32 %v158, %v159
    %v161 = vsel %vm155, %v154, 0.0
    %v162 = vadd.f32 %v160, %v161
    %163 = vadd.xlane.f32.xlu0 %v162
    %v164 = vpop.xlane.xlu0 %163
    %v165 = vrot.slane %v164, 4
    %v166 = vadd.f32 %v164, %v165
    %v167 = vrot.slane %v166, 2
    %v168 = vadd.f32 %v166, %v167
    %v169 = vrot.slane %v168, 1
    %v170 = vadd.f32 %v168, %v169
    %s171 = vtos %v170
    %v172 = vstv %s171
    %v173 = vadd.f32 %v150, %v172
    %174 = vst [vmem:[#allocation2] sm:$0xff] %v173
    // Predicated region
    $region14: #{tpu_custom_call.1} parent=1 // pred_check
      _
    $region15: #{tpu_custom_call.1} parent=1 // pred_check_branch
      %176 = sbr.rel (0) target = $region17
    $region16: #{tpu_custom_call.1} parent=1 // pred_region
      %178 = vsyncadd [#allocation3], 0
      %s180 = sshll.u32 [#allocation2], 4
      %s181 = int_to_ptr.vmem [resolvable:$true] %s180
      %s182 = sshll.u32 %s2, 4
      %s183 = int_to_ptr.hbm [resolvable:$true] %s182
      %185 = dma.vmem_to_hbm [thread:$0]  %s181, 128, %s183, [#allocation3]
    $region17: #{tpu_custom_call.1} parent=1 // pred_fallthru
      _
    // Predicated region
    $region18: #{tpu_custom_call.1} parent=1 // pred_check
      _
    $region19: #{tpu_custom_call.1} parent=1 // pred_check_branch
      %187 = sbr.rel (0) target = $region21
    $region20: #{tpu_custom_call.1} parent=1 // pred_region
      %189 = dma.done [#allocation3], 128
    $region21: #{tpu_custom_call.1} parent=1 // pred_fallthru
      _
    %190 = vsyncpa [#allocation3], 1

</llo_original>
